<compile_context>
chip_gen: v5e
topology: v5e:2x2
jax: 0.10.0
libtpu: 0.0.40
codegen_flags: <defaults>
</compile_context>

<pallas_src>
import functools

import jax
import jax.numpy as jnp
from jax.experimental import pallas as pl
from jax.experimental.pallas import tpu as pltpu


def _round_up(x, m):
    return ((x + m - 1) // m) * m


def _dummy_vd_kernel(x_ref, w_ref, c_ref, h_ref, *,
                     use_layernorm: bool, eps: float, n_valid: int):
    """One batch tile: linear (MXU, f32 acc) -> (masked layernorm) -> tanh."""
    # x_ref: [tb, D_in] native dtype, w_ref: [D_in, Hp] native dtype,
    # c_ref: [k, Hp] f32 with rows = (bias[, gamma, beta]).
    nx = jnp.dot(x_ref[...], w_ref[...], preferred_element_type=jnp.float32)
    nx = nx + c_ref[0:1, :]

    if use_layernorm:
        hp = nx.shape[-1]
        if n_valid == hp:
            mean = jnp.mean(nx, axis=-1, keepdims=True)
            cent = nx - mean
            var = jnp.mean(cent * cent, axis=-1, keepdims=True)
        else:
            # Hidden dim was padded to a lane-dense multiple of 128; reduce only
            # over the valid columns so LN statistics match the reference.
            col = jax.lax.broadcasted_iota(jnp.int32, nx.shape, 1)
            mask = col < n_valid
            inv_n = 1.0 / float(n_valid)
            mean = jnp.sum(jnp.where(mask, nx, 0.0), axis=-1, keepdims=True) * inv_n
            cent = nx - mean
            var = jnp.sum(jnp.where(mask, cent * cent, 0.0),
                          axis=-1, keepdims=True) * inv_n
        nx = cent * jax.lax.rsqrt(var + eps) * c_ref[1:2, :] + c_ref[2:3, :]

    h_ref[...] = jnp.tanh(nx).astype(h_ref.dtype)


def dummy_vd_cell(inputs, hidden_state, w_t, b, gamma=None, beta=None, *,
                  layernorm: bool = True, eps: float = 1e-5, block_b=None):
    """Pallas-backed forward of DummyVDCell. Returns (h, h); hidden_state unused."""
    del hidden_state  # dummy cell: hidden state is not used
    B, d_in = inputs.shape
    d_in_w, d_h = w_t.shape
    assert d_in == d_in_w

    # Lane-dense output: pad hidden dim up to a multiple of 128.
    d_h_pad = _round_up(d_h, 128)

    # Batch tile: large (up to 512 rows), multiple of 8; keep >= 2 grid steps
    # when the batch allows it (v7x has 2 TensorCores sharding the parallel axis).
    if block_b is None:
        if B >= 16:
            block_b = min(512, _round_up(pl.cdiv(B, 2), 8))
        else:
            block_b = _round_up(max(B, 1), 8)
    num_blocks = pl.cdiv(B, block_b)
    B_pad = num_blocks * block_b

    x = inputs
    if B_pad != B:
        x = jnp.pad(x, ((0, B_pad - B), (0, 0)))

    # Fused constant operand: rows = [bias] or [bias; gamma; beta].
    rows = [jnp.asarray(b, jnp.float32).reshape(1, d_h)]
    if layernorm:
        g = (jnp.ones((1, d_h), jnp.float32) if gamma is None
             else jnp.asarray(gamma, jnp.float32).reshape(1, d_h))
        bt = (jnp.zeros((1, d_h), jnp.float32) if beta is None
              else jnp.asarray(beta, jnp.float32).reshape(1, d_h))
        rows += [g, bt]
    c = jnp.concatenate(rows, axis=0)

    w = w_t
    if d_h_pad != d_h:
        w = jnp.pad(w, ((0, 0), (0, d_h_pad - d_h)))
        c = jnp.pad(c, ((0, 0), (0, d_h_pad - d_h)))

    out_dtype = inputs.dtype
    kernel = functools.partial(_dummy_vd_kernel, use_layernorm=layernorm,
                               eps=eps, n_valid=d_h)

    # Rough VMEM budget (double-buffered x/out + resident weight/consts) + headroom.
    est = (2 * block_b * d_in * x.dtype.itemsize
           + 2 * block_b * d_h_pad * jnp.dtype(out_dtype).itemsize
           + 2 * d_in * d_h_pad * w.dtype.itemsize
           + 2 * c.shape[0] * d_h_pad * 4)
    vmem_limit = min(max(int(est * 1.25) + (2 << 20), 32 << 20), 64 << 20)

    def run(single_buffer_consts):
        def const_spec(shape):
            idx = lambda i: (0,) * len(shape)
            if single_buffer_consts:
                # Constant index_map -> one resident buffer is enough.
                return pl.BlockSpec(shape, idx, pipeline_mode=pl.Buffered(1))
            return pl.BlockSpec(shape, idx)

        return pl.pallas_call(
            kernel,
            out_shape=jax.ShapeDtypeStruct((B_pad, d_h_pad), out_dtype),
            grid_spec=pltpu.PrefetchScalarGridSpec(
                num_scalar_prefetch=0,
                grid=(num_blocks,),
                in_specs=[
                    pl.BlockSpec((block_b, d_in), lambda i: (i, 0)),  # x tile
                    const_spec((d_in, d_h_pad)),                      # weight (resident)
                    const_spec((c.shape[0], d_h_pad)),                # bias/gamma/beta
                ],
                out_specs=pl.BlockSpec((block_b, d_h_pad), lambda i: (i, 0)),
            ),
            compiler_params=pltpu.CompilerParams(
                dimension_semantics=("parallel",),
                vmem_limit_bytes=vmem_limit),
        )(x, w, c)

    try:
        h = run(True)
    except Exception:
        # pl.Buffered(1) / pipeline_mode unsupported on this JAX build ->
        # fall back to default double-buffering (correctness unchanged).
        h = run(False)

    if (B_pad, d_h_pad) != (B, d_h):
        h = h[:B, :d_h]
    return h, h


def _reference(inputs, w_t, b, gamma, beta, layernorm, eps=1e-5):
    nx = inputs.astype(jnp.float32) @ w_t.astype(jnp.float32) + b.astype(jnp.float32)
    if layernorm:
        mean = jnp.mean(nx, axis=-1, keepdims=True)
        var = jnp.mean((nx - mean) ** 2, axis=-1, keepdims=True)
        nx = (nx - mean) * jax.lax.rsqrt(var + eps) * gamma + beta
    return jnp.tanh(nx)


if __name__ == "__main__":
    key = jax.random.PRNGKey(0)
    B, input_size, hidden_size = 64, 32, 32

    k_x, k_h, k_w, k_b = jax.random.split(key, 4)
    # bf16 activations/weights feed the MXU natively (f32 accumulation in-kernel).
    x = jax.random.normal(k_x, (B, input_size), dtype=jnp.float32).astype(jnp.bfloat16)
    h0 = jax.random.normal(k_h, (B, hidden_size), dtype=jnp.float32)  # ignored

    # Deterministic "LinearVD" mean-weight init (torch.nn.Linear-style scale).
    bound = 1.0 / (input_size ** 0.5)
    w = jax.random.uniform(k_w, (hidden_size, input_size),
                           minval=-bound, maxval=bound, dtype=jnp.float32)
    b = jax.random.uniform(k_b, (1, hidden_size),
                           minval=-bound, maxval=bound, dtype=jnp.float32)
    w_t = w.T.astype(jnp.bfloat16)  # [input_size, hidden_size] for x @ W.T

    gamma = jnp.ones((1, hidden_size), dtype=jnp.float32)
    beta = jnp.zeros((1, hidden_size), dtype=jnp.float32)

    use_layernorm = True
    h, h_same = dummy_vd_cell(x, h0, w_t, b, gamma, beta, layernorm=use_layernorm)
    jax.block_until_ready(h)

    ref = _reference(x, w_t, b, gamma, beta, use_layernorm)
    assert h.shape == (B, hidden_size)
    assert h.dtype == x.dtype
    max_err = float(jnp.max(jnp.abs(h.astype(jnp.float32) - ref)))
    assert max_err < 2e-2, f"mismatch vs reference, max abs err = {max_err}"
    assert jnp.array_equal(h, h_same)

    print("KERNEL_OK")
</pallas_src>

<mosaic_0001>
module attributes {stable_mosaic.version = 11 : i64} {
  func.func @_dummy_vd_kernel(%arg0: i32, %arg1: memref<32x32xbf16, #tpu.memory_space<vmem>>, %arg2: memref<32x128xbf16, #tpu.memory_space<vmem>>, %arg3: memref<3x128xf32, #tpu.memory_space<vmem>>, %arg4: memref<32x128xbf16, #tpu.memory_space<vmem>>) attributes {dimension_semantics = [#tpu.dimension_semantics<parallel>], iteration_bounds = array<i64: 2>, scalar_prefetch = 0 : i64, scratch_operands = 0 : i64, tpu.core_type = #tpu.core_type<tc>, window_params = [{transform_indices = @transform_0, window_bounds = array<i64: 32, 32>}, {pipeline_mode = #tpu.pipeline_mode<synchronous>, transform_indices = @transform_1, window_bounds = array<i64: 32, 128>}, {pipeline_mode = #tpu.pipeline_mode<synchronous>, transform_indices = @transform_2, window_bounds = array<i64: 3, 128>}, {transform_indices = @transform_3, window_bounds = array<i64: 32, 128>}]} {
    %c0 = arith.constant 0 : index
    %c0_0 = arith.constant 0 : index
    %0 = vector.load %arg1[%c0, %c0_0] : memref<32x32xbf16, #tpu.memory_space<vmem>>, vector<32x32xbf16>
    %c0_1 = arith.constant 0 : index
    %c0_2 = arith.constant 0 : index
    %1 = vector.load %arg2[%c0_1, %c0_2] : memref<32x128xbf16, #tpu.memory_space<vmem>>, vector<32x128xbf16>
    %cst = arith.constant dense<0.000000e+00> : vector<32x128xf32>
    %2 = tpu.matmul %0, %1, %cst {dimension_numbers = #tpu.dot_dimension_numbers<[1], [0], [0], [1], [0, 0, 1, 1], [], []>} : vector<32x32xbf16>, vector<32x128xbf16>, vector<32x128xf32> -> vector<32x128xf32>
    %c0_3 = arith.constant 0 : index
    %c0_4 = arith.constant 0 : index
    %3 = vector.load %arg3[%c0_3, %c0_4] : memref<3x128xf32, #tpu.memory_space<vmem>>, vector<1x128xf32>
    %4 = vector.broadcast %3 : vector<1x128xf32> to vector<32x128xf32>
    %5 = arith.addf %2, %4 : vector<32x128xf32>
    %6 = tpu.iota {dimensions = array<i32: 1>} : vector<32x128xi32>
    %c32_i32 = arith.constant 32 : i32
    %7 = vector.broadcast %c32_i32 : i32 to vector<32x128xi32>
    %8 = arith.cmpi slt, %6, %7 : vector<32x128xi32>
    %cst_5 = arith.constant 0.000000e+00 : f32
    %9 = vector.broadcast %cst_5 : f32 to vector<32x128xf32>
    %10 = arith.select %8, %5, %9 : vector<32x128xi1>, vector<32x128xf32>
    %cst_6 = arith.constant dense<0.000000e+00> : vector<32xf32>
    %11 = vector.multi_reduction <add>, %10, %cst_6 [1] : vector<32x128xf32> to vector<32xf32>
    %12 = vector.shape_cast %11 : vector<32xf32> to vector<32x1xf32>
    %cst_7 = arith.constant 3.125000e-02 : f32
    %13 = vector.broadcast %cst_7 : f32 to vector<32x1xf32>
    %14 = arith.mulf %12, %13 : vector<32x1xf32>
    %15 = vector.broadcast %14 : vector<32x1xf32> to vector<32x128xf32>
    %16 = arith.subf %5, %15 : vector<32x128xf32>
    %17 = arith.mulf %16, %16 : vector<32x128xf32>
    %cst_8 = arith.constant 0.000000e+00 : f32
    %18 = vector.broadcast %cst_8 : f32 to vector<32x128xf32>
    %19 = arith.select %8, %17, %18 : vector<32x128xi1>, vector<32x128xf32>
    %cst_9 = arith.constant dense<0.000000e+00> : vector<32xf32>
    %20 = vector.multi_reduction <add>, %19, %cst_9 [1] : vector<32x128xf32> to vector<32xf32>
    %21 = vector.shape_cast %20 : vector<32xf32> to vector<32x1xf32>
    %cst_10 = arith.constant 3.125000e-02 : f32
    %22 = vector.broadcast %cst_10 : f32 to vector<32x1xf32>
    %23 = arith.mulf %21, %22 : vector<32x1xf32>
    %cst_11 = arith.constant 9.99999974E-6 : f32
    %24 = vector.broadcast %cst_11 : f32 to vector<32x1xf32>
    %25 = arith.addf %23, %24 : vector<32x1xf32>
    %26 = math.rsqrt %25 : vector<32x1xf32>
    %27 = vector.broadcast %26 : vector<32x1xf32> to vector<32x128xf32>
    %28 = arith.mulf %16, %27 : vector<32x128xf32>
    %c1 = arith.constant 1 : index
    %c0_12 = arith.constant 0 : index
    %29 = vector.load %arg3[%c1, %c0_12] : memref<3x128xf32, #tpu.memory_space<vmem>>, vector<1x128xf32>
    %30 = vector.broadcast %29 : vector<1x128xf32> to vector<32x128xf32>
    %31 = arith.mulf %28, %30 : vector<32x128xf32>
    %c2 = arith.constant 2 : index
    %c0_13 = arith.constant 0 : index
    %32 = vector.load %arg3[%c2, %c0_13] : memref<3x128xf32, #tpu.memory_space<vmem>>, vector<1x128xf32>
    %33 = vector.broadcast %32 : vector<1x128xf32> to vector<32x128xf32>
    %34 = arith.addf %31, %33 : vector<32x128xf32>
    %35 = math.tanh %34 : vector<32x128xf32>
    %36 = arith.truncf %35 : vector<32x128xf32> to vector<32x128xbf16>
    %c0_14 = arith.constant 0 : index
    %c0_15 = arith.constant 0 : index
    %37 = vector.load %arg4[%c0_14, %c0_15] : memref<32x128xbf16, #tpu.memory_space<vmem>>, vector<32x128xbf16>
    tpu.vector_store %arg4[%c0_14, %c0_15], %36 {strides = array<i32>} : memref<32x128xbf16, #tpu.memory_space<vmem>>, vector<32x128xbf16>,
    return
  }
  func.func @transform_0(%arg0: i32) -> (i32, i32) {
    %c0_i32 = arith.constant 0 : i32
    %c0_i32_0 = arith.constant 0 : i32
    return %arg0, %c0_i32 : i32, i32
  }
  func.func @transform_1(%arg0: i32) -> (i32, i32) {
    %c0_i32 = arith.constant 0 : i32
    %c0_i32_0 = arith.constant 0 : i32
    %c0_i32_1 = arith.constant 0 : i32
    return %c0_i32, %c0_i32_0 : i32, i32
  }
  func.func @transform_2(%arg0: i32) -> (i32, i32) {
    %c0_i32 = arith.constant 0 : i32
    %c0_i32_0 = arith.constant 0 : i32
    %c0_i32_1 = arith.constant 0 : i32
    return %c0_i32, %c0_i32_0 : i32, i32
  }
  func.func @transform_3(%arg0: i32) -> (i32, i32) {
    %c0_i32 = arith.constant 0 : i32
    %c0_i32_0 = arith.constant 0 : i32
    return %arg0, %c0_i32 : i32, i32
  }
}

module attributes {stable_mosaic.version = 11 : i64} {
  func.func @_dummy_vd_kernel(%arg0: i32, %arg1: memref<32x32xbf16, #tpu.memory_space<vmem>>, %arg2: memref<32x128xbf16, #tpu.memory_space<vmem>>, %arg3: memref<3x128xf32, #tpu.memory_space<vmem>>, %arg4: memref<32x128xbf16, #tpu.memory_space<vmem>>) attributes {dimension_semantics = [#tpu.dimension_semantics<parallel>], iteration_bounds = array<i64: 2>, scalar_prefetch = 0 : i64, scratch_operands = 0 : i64, tpu.core_type = #tpu.core_type<tc>, window_params = [{transform_indices = @transform_0, window_bounds = array<i64: 32, 32>}, {pipeline_mode = #tpu.pipeline_mode<synchronous>, transform_indices = @transform_1, window_bounds = array<i64: 32, 128>}, {pipeline_mode = #tpu.pipeline_mode<synchronous>, transform_indices = @transform_2, window_bounds = array<i64: 3, 128>}, {transform_indices = @transform_3, window_bounds = array<i64: 32, 128>}]} {
    %c0 = arith.constant 0 : index
    %c0_0 = arith.constant 0 : index
    %0 = vector.load %arg1[%c0, %c0_0] : memref<32x32xbf16, #tpu.memory_space<vmem>>, vector<32x32xbf16>
    %c0_1 = arith.constant 0 : index
    %c0_2 = arith.constant 0 : index
    %1 = vector.load %arg2[%c0_1, %c0_2] : memref<32x128xbf16, #tpu.memory_space<vmem>>, vector<32x128xbf16>
    %cst = arith.constant dense<0.000000e+00> : vector<32x128xf32>
    %2 = tpu.matmul %0, %1, %cst {dimension_numbers = #tpu.dot_dimension_numbers<[1], [0], [0], [1], [0, 0, 1, 1], [], []>} : vector<32x32xbf16>, vector<32x128xbf16>, vector<32x128xf32> -> vector<32x128xf32>
    %c0_3 = arith.constant 0 : index
    %c0_4 = arith.constant 0 : index
    %3 = vector.load %arg3[%c0_3, %c0_4] : memref<3x128xf32, #tpu.memory_space<vmem>>, vector<1x128xf32>
    %4 = vector.broadcast %3 : vector<1x128xf32> to vector<32x128xf32>
    %5 = arith.addf %2, %4 : vector<32x128xf32>
    %6 = tpu.iota {dimensions = array<i32: 1>} : vector<32x128xi32>
    %c32_i32 = arith.constant 32 : i32
    %7 = vector.broadcast %c32_i32 : i32 to vector<32x128xi32>
    %8 = arith.cmpi slt, %6, %7 : vector<32x128xi32>
    %cst_5 = arith.constant 0.000000e+00 : f32
    %9 = vector.broadcast %cst_5 : f32 to vector<32x128xf32>
    %10 = arith.select %8, %5, %9 : vector<32x128xi1>, vector<32x128xf32>
    %cst_6 = arith.constant dense<0.000000e+00> : vector<32xf32>
    %11 = vector.multi_reduction <add>, %10, %cst_6 [1] : vector<32x128xf32> to vector<32xf32>
    %12 = vector.shape_cast %11 : vector<32xf32> to vector<32x1xf32>
    %cst_7 = arith.constant 3.125000e-02 : f32
    %13 = vector.broadcast %cst_7 : f32 to vector<32x1xf32>
    %14 = arith.mulf %12, %13 : vector<32x1xf32>
    %15 = vector.broadcast %14 : vector<32x1xf32> to vector<32x128xf32>
    %16 = arith.subf %5, %15 : vector<32x128xf32>
    %17 = arith.mulf %16, %16 : vector<32x128xf32>
    %cst_8 = arith.constant 0.000000e+00 : f32
    %18 = vector.broadcast %cst_8 : f32 to vector<32x128xf32>
    %19 = arith.select %8, %17, %18 : vector<32x128xi1>, vector<32x128xf32>
    %cst_9 = arith.constant dense<0.000000e+00> : vector<32xf32>
    %20 = vector.multi_reduction <add>, %19, %cst_9 [1] : vector<32x128xf32> to vector<32xf32>
    %21 = vector.shape_cast %20 : vector<32xf32> to vector<32x1xf32>
    %cst_10 = arith.constant 3.125000e-02 : f32
    %22 = vector.broadcast %cst_10 : f32 to vector<32x1xf32>
    %23 = arith.mulf %21, %22 : vector<32x1xf32>
    %cst_11 = arith.constant 9.99999974E-6 : f32
    %24 = vector.broadcast %cst_11 : f32 to vector<32x1xf32>
    %25 = arith.addf %23, %24 : vector<32x1xf32>
    %26 = math.rsqrt %25 : vector<32x1xf32>
    %27 = vector.broadcast %26 : vector<32x1xf32> to vector<32x128xf32>
    %28 = arith.mulf %16, %27 : vector<32x128xf32>
    %c1 = arith.constant 1 : index
    %c0_12 = arith.constant 0 : index
    %29 = vector.load %arg3[%c1, %c0_12] : memref<3x128xf32, #tpu.memory_space<vmem>>, vector<1x128xf32>
    %30 = vector.broadcast %29 : vector<1x128xf32> to vector<32x128xf32>
    %31 = arith.mulf %28, %30 : vector<32x128xf32>
    %c2 = arith.constant 2 : index
    %c0_13 = arith.constant 0 : index
    %32 = vector.load %arg3[%c2, %c0_13] : memref<3x128xf32, #tpu.memory_space<vmem>>, vector<1x128xf32>
    %33 = vector.broadcast %32 : vector<1x128xf32> to vector<32x128xf32>
    %34 = arith.addf %31, %33 : vector<32x128xf32>
    %35 = math.tanh %34 : vector<32x128xf32>
    %36 = arith.truncf %35 : vector<32x128xf32> to vector<32x128xbf16>
    %c0_14 = arith.constant 0 : index
    %c0_15 = arith.constant 0 : index
    %37 = vector.load %arg4[%c0_14, %c0_15] : memref<32x128xbf16, #tpu.memory_space<vmem>>, vector<32x128xbf16>
    tpu.vector_store %arg4[%c0_14, %c0_15], %36 {strides = array<i32>} : memref<32x128xbf16, #tpu.memory_space<vmem>>, vector<32x128xbf16>,
    return
  }
  func.func @transform_0(%arg0: i32) -> (i32, i32) {
    %c0_i32 = arith.constant 0 : i32
    %c0_i32_0 = arith.constant 0 : i32
    return %arg0, %c0_i32 : i32, i32
  }
  func.func @transform_1(%arg0: i32) -> (i32, i32) {
    %c0_i32 = arith.constant 0 : i32
    %c0_i32_0 = arith.constant 0 : i32
    %c0_i32_1 = arith.constant 0 : i32
    return %c0_i32, %c0_i32_0 : i32, i32
  }
  func.func @transform_2(%arg0: i32) -> (i32, i32) {
    %c0_i32 = arith.constant 0 : i32
    %c0_i32_0 = arith.constant 0 : i32
    %c0_i32_1 = arith.constant 0 : i32
    return %c0_i32, %c0_i32_0 : i32, i32
  }
  func.func @transform_3(%arg0: i32) -> (i32, i32) {
    %c0_i32 = arith.constant 0 : i32
    %c0_i32_0 = arith.constant 0 : i32
    return %arg0, %c0_i32 : i32, i32
  }
}

</mosaic_0001>

<llo_original>
// kernel: tpu_custom_call.1
$region0: #{tpu_custom_call.1}
  #allocation0 [shape = 'u32[]', space=smem, size = 0x4, offset = 0x4, fixed_abs, tag = 'smem constant byte address 0x4 - core index']
  #allocation1 [shape = 'u32[72,128]{1,0:T(1,128)}', space=vmem, size = 0x9000, scoped, tag = 'internal scratch']
  %s0 = inlined_call_operand.vmem [shape: bf16[64,32], index: 0, kind: input, shape index: {}]
  %s1 = inlined_call_operand.vmem [shape: bf16[32,128], index: 1, kind: input, shape index: {}]
  %s2 = inlined_call_operand.vmem [shape: f32[3,128], index: 2, kind: input, shape index: {}]
  %s3 = inlined_call_operand.hbm [shape: bf16[64,128], index: 3, kind: output, shape index: {}]
  %s4 = sld [smem:[#allocation0]]
  $region45: #{tpu_custom_call.1} parent=0
    _
  %s6 = ssub.s32 1, %s4
  %s7 = scalar_select 0, %s6, %s4
  $region1: #{tpu_custom_call.1} parent=0
    #allocation2 [shape = 'u8[16384]{0}', space=vmem, size = 0x4000, scoped, tag = 'output window, operand 0']
    #allocation3 [shape = 's32[2]{0}', space=sflag, size = 0x8, scoped, tag = 'scoped memory for tpu_custom_call.1']
    %8 = vsyncpa [#allocation3], 0
    %s9 = scalar_lea.sflag [#allocation3], 1
    %10 = vsyncpa %s9, 0
    loop: start=0, step=1, limit=4
    $region2: #{tpu_custom_call.1} parent=1 // loop_pre_header
      _
    $region3: #{tpu_custom_call.1} parent=1 // loop_header
      %s12 = sphi 0, %s16
      %p13 = scmp.ge.s32.totalorder %s12, 4
      %s22 = sphi 0, %s24
      %s25 = sphi 0, %s22
      %s26 = sphi 0, %s25
      %s42 = sphi 0, %s26
      %s46 = sphi 0, %s46
      %s48 = sphi 0, %s46
      %s49 = sphi 0, %s48
      %s63 = sphi 0, %s49
      %s67 = sphi 0, %s67
      %s69 = sphi 0, %s67
      %s70 = sphi 0, %s69
      %s84 = sphi 0, %s70
      %s90 = sphi 0, %s92
      %s93 = sphi 0, %s90
      %s94 = sphi 0, %s93
      %s110 = sphi 0, %s94
    $region4: #{tpu_custom_call.1} parent=1 // loop_header_branch
      %15 = sbr.rel (%p13) target = $region8
    $region5: #{tpu_custom_call.1} parent=1 // loop_body
      %s17 = ssub.s32 %s12, 1
      %s18 = ssub.s32 %s12, 2
      %s19 = sadd.s32 %s12, 1
      %s20 = ssub.s32 %s12, %s19
      %p21 = scmp.eq.s32.totalorder %s20, 0
      %s23 = sadd.s32 %s22, 1
      %s24 = scalar_select %p21, %s22, %s23
      %p27 = pneg %p21
      %p28 = scmp.eq.s32.totalorder %s12, 1
      %p29 = por %p27, %p28
      %p30 = scmp.ne.s32.totalorder %s22, %s25
      %p31 = scmp.eq.s32.totalorder %s12, 0
      %p32 = por %p30, %p31
      %p33 = scmp.ne.s32.totalorder %s22, %s25
      %p34 = scmp.eq.s32.totalorder %s17, 1
      %p35 = por %p33, %p34
      %p36 = scmp.ne.s32.totalorder %s25, %s26
      %p37 = scmp.eq.s32.totalorder %s17, 0
      %p38 = por %p36, %p37
      %p39 = scmp.ne.s32.totalorder %s25, %s26
      %p40 = scmp.eq.s32.totalorder %s18, 1
      %p41 = por %p39, %p40
      %p43 = scmp.ne.s32.totalorder %s26, %s42
      %p44 = scmp.eq.s32.totalorder %s18, 0
      %p45 = por %p43, %p44
      %s47 = sadd.s32 %s46, 1
      %p50 = scmp.eq.s32.totalorder %s12, 1
      %p51 = scmp.ne.s32.totalorder %s46, %s48
      %p52 = scmp.eq.s32.totalorder %s12, 0
      %p53 = por %p51, %p52
      %p54 = scmp.ne.s32.totalorder %s46, %s48
      %p55 = scmp.eq.s32.totalorder %s17, 1
      %p56 = por %p54, %p55
      %p57 = scmp.ne.s32.totalorder %s48, %s49
      %p58 = scmp.eq.s32.totalorder %s17, 0
      %p59 = por %p57, %p58
      %p60 = scmp.ne.s32.totalorder %s48, %s49
      %p61 = scmp.eq.s32.totalorder %s18, 1
      %p62 = por %p60, %p61
      %p64 = scmp.ne.s32.totalorder %s49, %s63
      %p65 = scmp.eq.s32.totalorder %s18, 0
      %p66 = por %p64, %p65
      %s68 = sadd.s32 %s67, 1
      %p71 = scmp.eq.s32.totalorder %s12, 1
      %p72 = scmp.ne.s32.totalorder %s67, %s69
      %p73 = scmp.eq.s32.totalorder %s12, 0
      %p74 = por %p72, %p73
      %p75 = scmp.ne.s32.totalorder %s67, %s69
      %p76 = scmp.eq.s32.totalorder %s17, 1
      %p77 = por %p75, %p76
      %p78 = scmp.ne.s32.totalorder %s69, %s70
      %p79 = scmp.eq.s32.totalorder %s17, 0
      %p80 = por %p78, %p79
      %p81 = scmp.ne.s32.totalorder %s69, %s70
      %p82 = scmp.eq.s32.totalorder %s18, 1
      %p83 = por %p81, %p82
      %p85 = scmp.ne.s32.totalorder %s70, %s84
      %p86 = scmp.eq.s32.totalorder %s18, 0
      %p87 = por %p85, %p86
      %s88 = ssub.s32 %s12, %s19
      %p89 = scmp.eq.s32.totalorder %s88, 0
      %s91 = sadd.s32 %s90, 1
      %s92 = scalar_select %p89, %s90, %s91
      %p95 = pneg %p89
      %p96 = scmp.eq.s32.totalorder %s12, 1
      %p97 = por %p95, %p96
      %p98 = scmp.ne.s32.totalorder %s90, %s93
      %p99 = scmp.eq.s32.totalorder %s12, 0
      %p100 = por %p98, %p99
      %p101 = scmp.ne.s32.totalorder %s90, %s93
      %p102 = scmp.eq.s32.totalorder %s17, 1
      %p103 = por %p101, %p102
      %p104 = scmp.ne.s32.totalorder %s93, %s94
      %p105 = scmp.eq.s32.totalorder %s17, 0
      %p106 = por %p104, %p105
      %p107 = scmp.ne.s32.totalorder %s93, %s94
      %p108 = scmp.eq.s32.totalorder %s18, 1
      %p109 = por %p107, %p108
      %p111 = scmp.ne.s32.totalorder %s94, %s110
      %p112 = scmp.eq.s32.totalorder %s18, 0
      %p113 = por %p111, %p112
      %p114 = scmp.le.s32.totalorder 1, %s12
      %p115 = scmp.lt.s32.totalorder %s12, 3
      %p116 = pnand %p114, %p115
      %p117 = pneg %p116
      // Predicated region
      $region9: #{tpu_custom_call.1} parent=5 // pred_check
        _
      $region10: #{tpu_custom_call.1} parent=5 // pred_check_branch
        %119 = sbr.rel (%p116) target = $region12
      $region11: #{tpu_custom_call.1} parent=5 // pred_region
        %s120 = ssub.s32 %s12, 1
        // Predicated region
        $region13: #{tpu_custom_call.1} parent=11 // pred_check
          %p121 = pneg %p59
        $region14: #{tpu_custom_call.1} parent=11 // pred_check_branch
          %123 = sbr.rel (%p121) target = $region16
        $region15: #{tpu_custom_call.1} parent=11 // pred_region
          _
        $region16: #{tpu_custom_call.1} parent=11 // pred_fallthru
          _
        // Predicated region
        $region17: #{tpu_custom_call.1} parent=11 // pred_check
          %p124 = pneg %p80
        $region18: #{tpu_custom_call.1} parent=11 // pred_check_branch
          %126 = sbr.rel (%p124) target = $region20
        $region19: #{tpu_custom_call.1} parent=11 // pred_region
          _
        $region20: #{tpu_custom_call.1} parent=11 // pred_fallthru
          _
      $region12: #{tpu_custom_call.1} parent=5 // pred_fallthru
        _
      %p127 = scmp.lt.s32.totalorder %s12, 2
      // Predicated region
      $region21: #{tpu_custom_call.1} parent=5 // pred_check
        %p128 = pneg %p127
      $region22: #{tpu_custom_call.1} parent=5 // pred_check_branch
        %130 = sbr.rel (%p128) target = $region24
      $region23: #{tpu_custom_call.1} parent=5 // pred_region
        // Predicated region
        $region25: #{tpu_custom_call.1} parent=23 // pred_check
          %p131 = pneg %p32
        $region26: #{tpu_custom_call.1} parent=23 // pred_check_branch
          %133 = sbr.rel (%p131) target = $region28
        $region27: #{tpu_custom_call.1} parent=23 // pred_region
          %s134 = smul.u32 4, %s12
          %p135 = scmp.lt.s32.totalorder %s134, 7
          %s136 = scalar_select %p135, %s134, 7
          %s137 = smul.addr %s136, 4
          %s138 = scalar_lea.vmem %s0, %s137
          %s139 = smul.u32 4, %s12
        $region28: #{tpu_custom_call.1} parent=23 // pred_fallthru
          _
      $region24: #{tpu_custom_call.1} parent=5 // pred_fallthru
        _
      %p140 = scmp.le.s32.totalorder 1, %s12
      %p141 = scmp.lt.s32.totalorder %s12, 3
      %p142 = pnand %p140, %p141
      %p143 = pneg %p142
      // Predicated region
      $region29: #{tpu_custom_call.1} parent=5 // pred_check
        _
      $region30: #{tpu_custom_call.1} parent=5 // pred_check_branch
        %145 = sbr.rel (%p142) target = $region32
      $region31: #{tpu_custom_call.1} parent=5 // pred_region
        %s146 = ssub.s32 %s12, 1
        %s147 = smul.u32 4, %s17
        %p148 = scmp.lt.s32.totalorder %s147, 7
        %s149 = scalar_select %p148, %s147, 7
        %s150 = smul.addr %s149, 4
        %s151 = scalar_lea.vmem %s0, %s150
        %p152 = pneg %p38
        %p153 = pneg %p35
        %p154 = pneg %p59
        %p155 = pneg %p56
        %p156 = pneg %p80
        %p157 = pneg %p77
        %p158 = pneg %p106
        %p159 = pneg %p103
        %s160 = sand.u32 %s93, 1
        %s161 = scalar_lea.sflag [#allocation3], %s160
        %s162 = sand.u32 %s93, 1
        %s163 = smul.addr %s162, 16
        %s164 = scalar_lea.vmem [#allocation2], %s163
        %s165 = smul.u32 4, %s17
        %p166 = scmp.lt.s32.totalorder %s165, 7
        %s167 = scalar_select %p166, %s165, 7
        %s168 = smul.addr %s167, 4
        %s169 = scalar_lea.vmem %s0, %s168
        %s170 = smul.u32 4, %s17
        %s171 = smul.u32 4, %s17
        %v173 = vld [vmem:[%s169] sm:$0xf]
        %v174 = vld [vmem:[%s169 + $0x4] sm:$0xf]
        %v175 = vld [vmem:[%s169 + $0x8] sm:$0xf]
        %v176 = vld [vmem:[%s169 + $0xc] sm:$0xf]
        %v177 = vld [vmem:[%s1] sm:$0xf]
        %v178 = vld [vmem:[%s1 + $0x4] sm:$0xf]
        %v179 = vld [vmem:[%s1 + $0x8] sm:$0xf]
        %v180 = vld [vmem:[%s1 + $0xc] sm:$0xf]
        %v181 = vld [vmem:[%s2] sm:$0x1]
        %v182 = vperm.slane %v181, 0
        %v187 = vunpack.c.l.b16 %v173
        %v188 = vunpack.c.l.b16 %v174
        %v189 = vunpack.c.l.b16 %v175
        %v190 = vunpack.c.l.b16 %v176
        %v191 = vpack.c.b16 %v188, %v187
        %v192 = vpack.c.b16 %v190, %v189
        %v197 = vunpack.c.l.b16 %v177
        %v198 = vunpack.c.l.b16 %v178
        %v199 = vunpack.c.l.b16 %v179
        %v200 = vunpack.c.l.b16 %v180
        %v201 = vpack.c.b16 %v198, %v197
        %v202 = vpack.c.b16 %v200, %v199
        %vm205 = vcmask 261120
        %v207 = vsel %vm205, %v191, 0
        %v210 = vsel %vm205, %v192, 0
        %212 = vmatpush.bf16.msra.mxu0 0
        %213 = vmatpush.bf16.msra.mxu0 0
        %214 = vmatpush.bf16.msra.mxu0 0
        %215 = vmatpush.bf16.msra.mxu0 0
        %216 = vmatpush.bf16.msra.mxu0 0
        %217 = vmatpush.bf16.msra.mxu0 0
        %218 = vmatpush.bf16.msra.mxu0 %v202
        %219 = vmatpush.bf16.msra.mxu0 %v201
        %220 = vmatmul.bf16.gmra.mxu0 %v207
        %v221 = vpop.f32.mrf.mxu0
        %v222 = vadd.f32 %v182, %v221
        %v223 = vpop.f32.mrf.mxu0
        %v224 = vadd.f32 %v182, %v223
        %225 = vmatmul.bf16.gmra.mxu0 %v210
        %v226 = vpop.f32.mrf.mxu0
        %v227 = vadd.f32 %v182, %v226
        %v228 = vpop.f32.mrf.mxu0
        %v229 = vadd.f32 %v182, %v228
        %230 = vdwg.mxu0
        %v231 = vlaneseq
        %v232 = vand.u32 %v231, 127
        %vm233 = vcmp.lt.s32.totalorder %v232, 32
        %v234 = vsel %vm233, %v222, 0.0
        %v235 = vsel %vm233, %v224, 0.0
        %v236 = vsel %vm233, %v227, 0.0
        %v237 = vsel %vm233, %v229, 0.0
        %238 = vadd.xlane.f32.xlu0 %v234
        %v239 = vpop.xlane.xlu0 %238
        %240 = vadd.xlane.f32.xlu0 %v235
        %v241 = vpop.xlane.xlu0 %240
        %242 = vadd.xlane.f32.xlu0 %v236
        %v243 = vpop.xlane.xlu0 %242
        %244 = vadd.xlane.f32.xlu0 %v237
        %v245 = vpop.xlane.xlu0 %244
        %v246 = vmul.f32 %v239, 0.03125
        %v247 = vmul.f32 %v241, 0.03125
        %v248 = vmul.f32 %v243, 0.03125
        %v249 = vmul.f32 %v245, 0.03125
        %v250 = vsub.f32 %v222, %v246
        %v251 = vsub.f32 %v224, %v247
        %v252 = vsub.f32 %v227, %v248
        %v253 = vsub.f32 %v229, %v249
        %v254 = vmul.f32 %v250, %v250
        %v255 = vmul.f32 %v251, %v251
        %v256 = vmul.f32 %v252, %v252
        %v257 = vmul.f32 %v253, %v253
        %v258 = vsel %vm233, %v254, 0.0
        %v259 = vsel %vm233, %v255, 0.0
        %v260 = vsel %vm233, %v256, 0.0
        %v261 = vsel %vm233, %v257, 0.0
        %262 = vadd.xlane.f32.xlu0 %v258
        %v263 = vpop.xlane.xlu0 %262
        %264 = vadd.xlane.f32.xlu0 %v259
        %v265 = vpop.xlane.xlu0 %264
        %266 = vadd.xlane.f32.xlu0 %v260
        %v267 = vpop.xlane.xlu0 %266
        %268 = vadd.xlane.f32.xlu0 %v261
        %v269 = vpop.xlane.xlu0 %268
        %v270 = vmul.f32 %v263, 0.03125
        %v271 = vmul.f32 %v265, 0.03125
        %v272 = vmul.f32 %v267, 0.03125
        %v273 = vmul.f32 %v269, 0.03125
        %v274 = vadd.f32 %v270, 1e-05
        %v275 = vadd.f32 %v271, 1e-05
        %v276 = vadd.f32 %v272, 1e-05
        %v277 = vadd.f32 %v273, 1e-05
        %v278 = vrsqrt.pop %v274
        %v279 = vmul.f32 %v278, %v274
        %v280 = vmul.f32 %v279, %v278
        %v281 = vmul.f32 0.5, %v280
        %v282 = vsub.f32 1.5, %v281
        %v283 = vmul.f32 %v278, %v282
        %vm284 = vweird.f32 %v274
        %vm285 = vweird.f32 %v278
        %vm286 = vmor %vm284, %vm285
        %v287 = vsel %vm286, %v278, %v283
        %v288 = vrsqrt.pop %v275
        %v289 = vmul.f32 %v288, %v275
        %v290 = vmul.f32 %v289, %v288
        %v291 = vmul.f32 0.5, %v290
        %v292 = vsub.f32 1.5, %v291
        %v293 = vmul.f32 %v288, %v292
        %vm294 = vweird.f32 %v275
        %vm295 = vweird.f32 %v288
        %vm296 = vmor %vm294, %vm295
        %v297 = vsel %vm296, %v288, %v293
        %v298 = vrsqrt.pop %v276
        %v299 = vmul.f32 %v298, %v276
        %v300 = vmul.f32 %v299, %v298
        %v301 = vmul.f32 0.5, %v300
        %v302 = vsub.f32 1.5, %v301
        %v303 = vmul.f32 %v298, %v302
        %vm304 = vweird.f32 %v276
        %vm305 = vweird.f32 %v298
        %vm306 = vmor %vm304, %vm305
        %v307 = vsel %vm306, %v298, %v303
        %v308 = vrsqrt.pop %v277
        %v309 = vmul.f32 %v308, %v277
        %v310 = vmul.f32 %v309, %v308
        %v311 = vmul.f32 0.5, %v310
        %v312 = vsub.f32 1.5, %v311
        %v313 = vmul.f32 %v308, %v312
        %vm314 = vweird.f32 %v277
        %vm315 = vweird.f32 %v308
        %vm316 = vmor %vm314, %vm315
        %v317 = vsel %vm316, %v308, %v313
        %v318 = vmul.f32 %v250, %v287
        %v319 = vmul.f32 %v251, %v297
        %v320 = vmul.f32 %v252, %v307
        %v321 = vmul.f32 %v253, %v317
        %v322 = vld [vmem:[%s2 + $0x1] sm:$0x1]
        %v323 = vperm.slane %v322, 0
        %v324 = vmul.f32 %v318, %v323
        %v325 = vmul.f32 %v319, %v323
        %v326 = vmul.f32 %v320, %v323
        %v327 = vmul.f32 %v321, %v323
        %v328 = vld [vmem:[%s2 + $0x2] sm:$0x1]
        %v329 = vperm.slane %v328, 0
        %v330 = vadd.f32 %v324, %v329
        %v331 = vadd.f32 %v325, %v329
        %v332 = vadd.f32 %v326, %v329
        %v333 = vadd.f32 %v327, %v329
        %v334 = vtanh.pop %v330
        %v335 = vtanh.pop %v331
        %v336 = vtanh.pop %v332
        %v337 = vtanh.pop %v333
        %v338 = vpack.c.bf16 %v334, %v334
        %v339 = vpack.c.bf16 %v335, %v335
        %v340 = vpack.c.bf16 %v336, %v336
        %v341 = vpack.c.bf16 %v337, %v337
        %342 = vst [vmem:[%s164] sm:$0xf] %v338
        %343 = vst [vmem:[%s164 + $0x4] sm:$0xf] %v339
        %344 = vst [vmem:[%s164 + $0x8] sm:$0xf] %v340
        %345 = vst [vmem:[%s164 + $0xc] sm:$0xf] %v341
        %s346 = sand.u32 %s93, 1
        %s347 = scalar_lea.sflag [#allocation3], %s346
        %s348 = sand.u32 %s93, 1
        %s349 = smul.addr %s348, 16
        %s350 = scalar_lea.vmem [#allocation2], %s349
        // Predicated region
        $region33: #{tpu_custom_call.1} parent=31 // pred_check
          %p351 = pneg %p103
        $region34: #{tpu_custom_call.1} parent=31 // pred_check_branch
          %353 = sbr.rel (%p351) target = $region36
        $region35: #{tpu_custom_call.1} parent=31 // pred_region
          %s354 = smul.u32 4, %s17
          %356 = vsyncadd %s347, 0
          %s357 = smul.addr %s354, 4
          %s358 = scalar_lea.hbm %s3, %s357
          %s359 = sshll.u32 %s350, 4
          %s360 = int_to_ptr.vmem [resolvable:$true] %s359
          %s361 = sshll.u32 %s358, 4
          %s362 = int_to_ptr.hbm [resolvable:$true] %s361
          %367 = dma.vmem_to_hbm [thread:$0]  %s360, 256, %s362, %s347, 64, 64, 4
        $region36: #{tpu_custom_call.1} parent=31 // pred_fallthru
          _
      $region32: #{tpu_custom_call.1} parent=5 // pred_fallthru
        _
      %p368 = scmp.le.s32.totalorder 2, %s12
      // Predicated region
      $region37: #{tpu_custom_call.1} parent=5 // pred_check
        %p369 = pneg %p368
      $region38: #{tpu_custom_call.1} parent=5 // pred_check_branch
        %371 = sbr.rel (%p369) target = $region40
      $region39: #{tpu_custom_call.1} parent=5 // pred_region
        %s372 = ssub.s32 %s12, 2
        // Predicated region
        $region41: #{tpu_custom_call.1} parent=39 // pred_check
          %p373 = pneg %p109
        $region42: #{tpu_custom_call.1} parent=39 // pred_check_branch
          %375 = sbr.rel (%p373) target = $region44
        $region43: #{tpu_custom_call.1} parent=39 // pred_region
          %s376 = sand.u32 %s94, 1
          %s377 = scalar_lea.sflag [#allocation3], %s376
          %s378 = sand.u32 %s94, 1
          %s379 = smul.addr %s378, 16
          %s380 = scalar_lea.vmem [#allocation2], %s379
          %382 = dma.done %s377, 256
        $region44: #{tpu_custom_call.1} parent=39 // pred_fallthru
          _
      $region40: #{tpu_custom_call.1} parent=5 // pred_fallthru
        _
    $region6: #{tpu_custom_call.1} parent=1 // loop_footer
      %s16 = sadd.s32 1, %s12
    $region7: #{tpu_custom_call.1} parent=1 // loop_footer_branch
      %11 = sbr.rel target = $region3
    $region8: #{tpu_custom_call.1} parent=1 // loop_exit
      _
    %383 = vsyncpa [#allocation3], 1
    %s384 = scalar_lea.sflag [#allocation3], 1
    %385 = vsyncpa %s384, 1

// kernel: tpu_custom_call.1
$region0: #{tpu_custom_call.1}
  #allocation0 [shape = 'u32[]', space=smem, size = 0x4, offset = 0x4, fixed_abs, tag = 'smem constant byte address 0x4 - core index']
  #allocation1 [shape = 'u32[72,128]{1,0:T(1,128)}', space=vmem, size = 0x9000, scoped, tag = 'internal scratch']
  %s0 = inlined_call_operand.vmem [shape: bf16[64,32], index: 0, kind: input, shape index: {}]
  %s1 = inlined_call_operand.vmem [shape: bf16[32,128], index: 1, kind: input, shape index: {}]
  %s2 = inlined_call_operand.vmem [shape: f32[3,128], index: 2, kind: input, shape index: {}]
  %s3 = inlined_call_operand.hbm [shape: bf16[64,128], index: 3, kind: output, shape index: {}]
  %s4 = sld [smem:[#allocation0]]
  $region45: #{tpu_custom_call.1} parent=0
    _
  %s6 = ssub.s32 1, %s4
  %s7 = scalar_select 0, %s6, %s4
  $region1: #{tpu_custom_call.1} parent=0
    #allocation2 [shape = 'u8[16384]{0}', space=vmem, size = 0x4000, scoped, tag = 'output window, operand 0']
    #allocation3 [shape = 's32[2]{0}', space=sflag, size = 0x8, scoped, tag = 'scoped memory for tpu_custom_call.1']
    %8 = vsyncpa [#allocation3], 0
    %s9 = scalar_lea.sflag [#allocation3], 1
    %10 = vsyncpa %s9, 0
    loop: start=0, step=1, limit=4
    $region2: #{tpu_custom_call.1} parent=1 // loop_pre_header
      _
    $region3: #{tpu_custom_call.1} parent=1 // loop_header
      %s12 = sphi 0, %s16
      %p13 = scmp.ge.s32.totalorder %s12, 4
      %s22 = sphi 0, %s24
      %s25 = sphi 0, %s22
      %s26 = sphi 0, %s25
      %s42 = sphi 0, %s26
      %s46 = sphi 0, %s46
      %s48 = sphi 0, %s46
      %s49 = sphi 0, %s48
      %s63 = sphi 0, %s49
      %s67 = sphi 0, %s67
      %s69 = sphi 0, %s67
      %s70 = sphi 0, %s69
      %s84 = sphi 0, %s70
      %s90 = sphi 0, %s92
      %s93 = sphi 0, %s90
      %s94 = sphi 0, %s93
      %s110 = sphi 0, %s94
    $region4: #{tpu_custom_call.1} parent=1 // loop_header_branch
      %15 = sbr.rel (%p13) target = $region8
    $region5: #{tpu_custom_call.1} parent=1 // loop_body
      %s17 = ssub.s32 %s12, 1
      %s18 = ssub.s32 %s12, 2
      %s19 = sadd.s32 %s12, 1
      %s20 = ssub.s32 %s12, %s19
      %p21 = scmp.eq.s32.totalorder %s20, 0
      %s23 = sadd.s32 %s22, 1
      %s24 = scalar_select %p21, %s22, %s23
      %p27 = pneg %p21
      %p28 = scmp.eq.s32.totalorder %s12, 1
      %p29 = por %p27, %p28
      %p30 = scmp.ne.s32.totalorder %s22, %s25
      %p31 = scmp.eq.s32.totalorder %s12, 0
      %p32 = por %p30, %p31
      %p33 = scmp.ne.s32.totalorder %s22, %s25
      %p34 = scmp.eq.s32.totalorder %s17, 1
      %p35 = por %p33, %p34
      %p36 = scmp.ne.s32.totalorder %s25, %s26
      %p37 = scmp.eq.s32.totalorder %s17, 0
      %p38 = por %p36, %p37
      %p39 = scmp.ne.s32.totalorder %s25, %s26
      %p40 = scmp.eq.s32.totalorder %s18, 1
      %p41 = por %p39, %p40
      %p43 = scmp.ne.s32.totalorder %s26, %s42
      %p44 = scmp.eq.s32.totalorder %s18, 0
      %p45 = por %p43, %p44
      %s47 = sadd.s32 %s46, 1
      %p50 = scmp.eq.s32.totalorder %s12, 1
      %p51 = scmp.ne.s32.totalorder %s46, %s48
      %p52 = scmp.eq.s32.totalorder %s12, 0
      %p53 = por %p51, %p52
      %p54 = scmp.ne.s32.totalorder %s46, %s48
      %p55 = scmp.eq.s32.totalorder %s17, 1
      %p56 = por %p54, %p55
      %p57 = scmp.ne.s32.totalorder %s48, %s49
      %p58 = scmp.eq.s32.totalorder %s17, 0
      %p59 = por %p57, %p58
      %p60 = scmp.ne.s32.totalorder %s48, %s49
      %p61 = scmp.eq.s32.totalorder %s18, 1
      %p62 = por %p60, %p61
      %p64 = scmp.ne.s32.totalorder %s49, %s63
      %p65 = scmp.eq.s32.totalorder %s18, 0
      %p66 = por %p64, %p65
      %s68 = sadd.s32 %s67, 1
      %p71 = scmp.eq.s32.totalorder %s12, 1
      %p72 = scmp.ne.s32.totalorder %s67, %s69
      %p73 = scmp.eq.s32.totalorder %s12, 0
      %p74 = por %p72, %p73
      %p75 = scmp.ne.s32.totalorder %s67, %s69
      %p76 = scmp.eq.s32.totalorder %s17, 1
      %p77 = por %p75, %p76
      %p78 = scmp.ne.s32.totalorder %s69, %s70
      %p79 = scmp.eq.s32.totalorder %s17, 0
      %p80 = por %p78, %p79
      %p81 = scmp.ne.s32.totalorder %s69, %s70
      %p82 = scmp.eq.s32.totalorder %s18, 1
      %p83 = por %p81, %p82
      %p85 = scmp.ne.s32.totalorder %s70, %s84
      %p86 = scmp.eq.s32.totalorder %s18, 0
      %p87 = por %p85, %p86
      %s88 = ssub.s32 %s12, %s19
      %p89 = scmp.eq.s32.totalorder %s88, 0
      %s91 = sadd.s32 %s90, 1
      %s92 = scalar_select %p89, %s90, %s91
      %p95 = pneg %p89
      %p96 = scmp.eq.s32.totalorder %s12, 1
      %p97 = por %p95, %p96
      %p98 = scmp.ne.s32.totalorder %s90, %s93
      %p99 = scmp.eq.s32.totalorder %s12, 0
      %p100 = por %p98, %p99
      %p101 = scmp.ne.s32.totalorder %s90, %s93
      %p102 = scmp.eq.s32.totalorder %s17, 1
      %p103 = por %p101, %p102
      %p104 = scmp.ne.s32.totalorder %s93, %s94
      %p105 = scmp.eq.s32.totalorder %s17, 0
      %p106 = por %p104, %p105
      %p107 = scmp.ne.s32.totalorder %s93, %s94
      %p108 = scmp.eq.s32.totalorder %s18, 1
      %p109 = por %p107, %p108
      %p111 = scmp.ne.s32.totalorder %s94, %s110
      %p112 = scmp.eq.s32.totalorder %s18, 0
      %p113 = por %p111, %p112
      %p114 = scmp.le.s32.totalorder 1, %s12
      %p115 = scmp.lt.s32.totalorder %s12, 3
      %p116 = pnand %p114, %p115
      %p117 = pneg %p116
      // Predicated region
      $region9: #{tpu_custom_call.1} parent=5 // pred_check
        _
      $region10: #{tpu_custom_call.1} parent=5 // pred_check_branch
        %119 = sbr.rel (%p116) target = $region12
      $region11: #{tpu_custom_call.1} parent=5 // pred_region
        %s120 = ssub.s32 %s12, 1
        // Predicated region
        $region13: #{tpu_custom_call.1} parent=11 // pred_check
          %p121 = pneg %p59
        $region14: #{tpu_custom_call.1} parent=11 // pred_check_branch
          %123 = sbr.rel (%p121) target = $region16
        $region15: #{tpu_custom_call.1} parent=11 // pred_region
          _
        $region16: #{tpu_custom_call.1} parent=11 // pred_fallthru
          _
        // Predicated region
        $region17: #{tpu_custom_call.1} parent=11 // pred_check
          %p124 = pneg %p80
        $region18: #{tpu_custom_call.1} parent=11 // pred_check_branch
          %126 = sbr.rel (%p124) target = $region20
        $region19: #{tpu_custom_call.1} parent=11 // pred_region
          _
        $region20: #{tpu_custom_call.1} parent=11 // pred_fallthru
          _
      $region12: #{tpu_custom_call.1} parent=5 // pred_fallthru
        _
      %p127 = scmp.lt.s32.totalorder %s12, 2
      // Predicated region
      $region21: #{tpu_custom_call.1} parent=5 // pred_check
        %p128 = pneg %p127
      $region22: #{tpu_custom_call.1} parent=5 // pred_check_branch
        %130 = sbr.rel (%p128) target = $region24
      $region23: #{tpu_custom_call.1} parent=5 // pred_region
        // Predicated region
        $region25: #{tpu_custom_call.1} parent=23 // pred_check
          %p131 = pneg %p32
        $region26: #{tpu_custom_call.1} parent=23 // pred_check_branch
          %133 = sbr.rel (%p131) target = $region28
        $region27: #{tpu_custom_call.1} parent=23 // pred_region
          %s134 = smul.u32 4, %s12
          %p135 = scmp.lt.s32.totalorder %s134, 7
          %s136 = scalar_select %p135, %s134, 7
          %s137 = smul.addr %s136, 4
          %s138 = scalar_lea.vmem %s0, %s137
          %s139 = smul.u32 4, %s12
        $region28: #{tpu_custom_call.1} parent=23 // pred_fallthru
          _
      $region24: #{tpu_custom_call.1} parent=5 // pred_fallthru
        _
      %p140 = scmp.le.s32.totalorder 1, %s12
      %p141 = scmp.lt.s32.totalorder %s12, 3
      %p142 = pnand %p140, %p141
      %p143 = pneg %p142
      // Predicated region
      $region29: #{tpu_custom_call.1} parent=5 // pred_check
        _
      $region30: #{tpu_custom_call.1} parent=5 // pred_check_branch
        %145 = sbr.rel (%p142) target = $region32
      $region31: #{tpu_custom_call.1} parent=5 // pred_region
        %s146 = ssub.s32 %s12, 1
        %s147 = smul.u32 4, %s17
        %p148 = scmp.lt.s32.totalorder %s147, 7
        %s149 = scalar_select %p148, %s147, 7
        %s150 = smul.addr %s149, 4
        %s151 = scalar_lea.vmem %s0, %s150
        %p152 = pneg %p38
        %p153 = pneg %p35
        %p154 = pneg %p59
        %p155 = pneg %p56
        %p156 = pneg %p80
        %p157 = pneg %p77
        %p158 = pneg %p106
        %p159 = pneg %p103
        %s160 = sand.u32 %s93, 1
        %s161 = scalar_lea.sflag [#allocation3], %s160
        %s162 = sand.u32 %s93, 1
        %s163 = smul.addr %s162, 16
        %s164 = scalar_lea.vmem [#allocation2], %s163
        %s165 = smul.u32 4, %s17
        %p166 = scmp.lt.s32.totalorder %s165, 7
        %s167 = scalar_select %p166, %s165, 7
        %s168 = smul.addr %s167, 4
        %s169 = scalar_lea.vmem %s0, %s168
        %s170 = smul.u32 4, %s17
        %s171 = smul.u32 4, %s17
        %v173 = vld [vmem:[%s169] sm:$0xf]
        %v174 = vld [vmem:[%s169 + $0x4] sm:$0xf]
        %v175 = vld [vmem:[%s169 + $0x8] sm:$0xf]
        %v176 = vld [vmem:[%s169 + $0xc] sm:$0xf]
        %v177 = vld [vmem:[%s1] sm:$0xf]
        %v178 = vld [vmem:[%s1 + $0x4] sm:$0xf]
        %v179 = vld [vmem:[%s1 + $0x8] sm:$0xf]
        %v180 = vld [vmem:[%s1 + $0xc] sm:$0xf]
        %v181 = vld [vmem:[%s2] sm:$0x1]
        %v182 = vperm.slane %v181, 0
        %v187 = vunpack.c.l.b16 %v173
        %v188 = vunpack.c.l.b16 %v174
        %v189 = vunpack.c.l.b16 %v175
        %v190 = vunpack.c.l.b16 %v176
        %v191 = vpack.c.b16 %v188, %v187
        %v192 = vpack.c.b16 %v190, %v189
        %v197 = vunpack.c.l.b16 %v177
        %v198 = vunpack.c.l.b16 %v178
        %v199 = vunpack.c.l.b16 %v179
        %v200 = vunpack.c.l.b16 %v180
        %v201 = vpack.c.b16 %v198, %v197
        %v202 = vpack.c.b16 %v200, %v199
        %vm205 = vcmask 261120
        %v207 = vsel %vm205, %v191, 0
        %v210 = vsel %vm205, %v192, 0
        %212 = vmatpush.bf16.msra.mxu0 0
        %213 = vmatpush.bf16.msra.mxu0 0
        %214 = vmatpush.bf16.msra.mxu0 0
        %215 = vmatpush.bf16.msra.mxu0 0
        %216 = vmatpush.bf16.msra.mxu0 0
        %217 = vmatpush.bf16.msra.mxu0 0
        %218 = vmatpush.bf16.msra.mxu0 %v202
        %219 = vmatpush.bf16.msra.mxu0 %v201
        %220 = vmatmul.bf16.gmra.mxu0 %v207
        %v221 = vpop.f32.mrf.mxu0
        %v222 = vadd.f32 %v182, %v221
        %v223 = vpop.f32.mrf.mxu0
        %v224 = vadd.f32 %v182, %v223
        %225 = vmatmul.bf16.gmra.mxu0 %v210
        %v226 = vpop.f32.mrf.mxu0
        %v227 = vadd.f32 %v182, %v226
        %v228 = vpop.f32.mrf.mxu0
        %v229 = vadd.f32 %v182, %v228
        %230 = vdwg.mxu0
        %v231 = vlaneseq
        %v232 = vand.u32 %v231, 127
        %vm233 = vcmp.lt.s32.totalorder %v232, 32
        %v234 = vsel %vm233, %v222, 0.0
        %v235 = vsel %vm233, %v224, 0.0
        %v236 = vsel %vm233, %v227, 0.0
        %v237 = vsel %vm233, %v229, 0.0
        %238 = vadd.xlane.f32.xlu0 %v234
        %v239 = vpop.xlane.xlu0 %238
        %240 = vadd.xlane.f32.xlu0 %v235
        %v241 = vpop.xlane.xlu0 %240
        %242 = vadd.xlane.f32.xlu0 %v236
        %v243 = vpop.xlane.xlu0 %242
        %244 = vadd.xlane.f32.xlu0 %v237
        %v245 = vpop.xlane.xlu0 %244
        %v246 = vmul.f32 %v239, 0.03125
        %v247 = vmul.f32 %v241, 0.03125
        %v248 = vmul.f32 %v243, 0.03125
        %v249 = vmul.f32 %v245, 0.03125
        %v250 = vsub.f32 %v222, %v246
        %v251 = vsub.f32 %v224, %v247
        %v252 = vsub.f32 %v227, %v248
        %v253 = vsub.f32 %v229, %v249
        %v254 = vmul.f32 %v250, %v250
        %v255 = vmul.f32 %v251, %v251
        %v256 = vmul.f32 %v252, %v252
        %v257 = vmul.f32 %v253, %v253
        %v258 = vsel %vm233, %v254, 0.0
        %v259 = vsel %vm233, %v255, 0.0
        %v260 = vsel %vm233, %v256, 0.0
        %v261 = vsel %vm233, %v257, 0.0
        %262 = vadd.xlane.f32.xlu0 %v258
        %v263 = vpop.xlane.xlu0 %262
        %264 = vadd.xlane.f32.xlu0 %v259
        %v265 = vpop.xlane.xlu0 %264
        %266 = vadd.xlane.f32.xlu0 %v260
        %v267 = vpop.xlane.xlu0 %266
        %268 = vadd.xlane.f32.xlu0 %v261
        %v269 = vpop.xlane.xlu0 %268
        %v270 = vmul.f32 %v263, 0.03125
        %v271 = vmul.f32 %v265, 0.03125
        %v272 = vmul.f32 %v267, 0.03125
        %v273 = vmul.f32 %v269, 0.03125
        %v274 = vadd.f32 %v270, 1e-05
        %v275 = vadd.f32 %v271, 1e-05
        %v276 = vadd.f32 %v272, 1e-05
        %v277 = vadd.f32 %v273, 1e-05
        %v278 = vrsqrt.pop %v274
        %v279 = vmul.f32 %v278, %v274
        %v280 = vmul.f32 %v279, %v278
        %v281 = vmul.f32 0.5, %v280
        %v282 = vsub.f32 1.5, %v281
        %v283 = vmul.f32 %v278, %v282
        %vm284 = vweird.f32 %v274
        %vm285 = vweird.f32 %v278
        %vm286 = vmor %vm284, %vm285
        %v287 = vsel %vm286, %v278, %v283
        %v288 = vrsqrt.pop %v275
        %v289 = vmul.f32 %v288, %v275
        %v290 = vmul.f32 %v289, %v288
        %v291 = vmul.f32 0.5, %v290
        %v292 = vsub.f32 1.5, %v291
        %v293 = vmul.f32 %v288, %v292
        %vm294 = vweird.f32 %v275
        %vm295 = vweird.f32 %v288
        %vm296 = vmor %vm294, %vm295
        %v297 = vsel %vm296, %v288, %v293
        %v298 = vrsqrt.pop %v276
        %v299 = vmul.f32 %v298, %v276
        %v300 = vmul.f32 %v299, %v298
        %v301 = vmul.f32 0.5, %v300
        %v302 = vsub.f32 1.5, %v301
        %v303 = vmul.f32 %v298, %v302
        %vm304 = vweird.f32 %v276
        %vm305 = vweird.f32 %v298
        %vm306 = vmor %vm304, %vm305
        %v307 = vsel %vm306, %v298, %v303
        %v308 = vrsqrt.pop %v277
        %v309 = vmul.f32 %v308, %v277
        %v310 = vmul.f32 %v309, %v308
        %v311 = vmul.f32 0.5, %v310
        %v312 = vsub.f32 1.5, %v311
        %v313 = vmul.f32 %v308, %v312
        %vm314 = vweird.f32 %v277
        %vm315 = vweird.f32 %v308
        %vm316 = vmor %vm314, %vm315
        %v317 = vsel %vm316, %v308, %v313
        %v318 = vmul.f32 %v250, %v287
        %v319 = vmul.f32 %v251, %v297
        %v320 = vmul.f32 %v252, %v307
        %v321 = vmul.f32 %v253, %v317
        %v322 = vld [vmem:[%s2 + $0x1] sm:$0x1]
        %v323 = vperm.slane %v322, 0
        %v324 = vmul.f32 %v318, %v323
        %v325 = vmul.f32 %v319, %v323
        %v326 = vmul.f32 %v320, %v323
        %v327 = vmul.f32 %v321, %v323
        %v328 = vld [vmem:[%s2 + $0x2] sm:$0x1]
        %v329 = vperm.slane %v328, 0
        %v330 = vadd.f32 %v324, %v329
        %v331 = vadd.f32 %v325, %v329
        %v332 = vadd.f32 %v326, %v329
        %v333 = vadd.f32 %v327, %v329
        %v334 = vtanh.pop %v330
        %v335 = vtanh.pop %v331
        %v336 = vtanh.pop %v332
        %v337 = vtanh.pop %v333
        %v338 = vpack.c.bf16 %v334, %v334
        %v339 = vpack.c.bf16 %v335, %v335
        %v340 = vpack.c.bf16 %v336, %v336
        %v341 = vpack.c.bf16 %v337, %v337
        %342 = vst [vmem:[%s164] sm:$0xf] %v338
        %343 = vst [vmem:[%s164 + $0x4] sm:$0xf] %v339
        %344 = vst [vmem:[%s164 + $0x8] sm:$0xf] %v340
        %345 = vst [vmem:[%s164 + $0xc] sm:$0xf] %v341
        %s346 = sand.u32 %s93, 1
        %s347 = scalar_lea.sflag [#allocation3], %s346
        %s348 = sand.u32 %s93, 1
        %s349 = smul.addr %s348, 16
        %s350 = scalar_lea.vmem [#allocation2], %s349
        // Predicated region
        $region33: #{tpu_custom_call.1} parent=31 // pred_check
          %p351 = pneg %p103
        $region34: #{tpu_custom_call.1} parent=31 // pred_check_branch
          %353 = sbr.rel (%p351) target = $region36
        $region35: #{tpu_custom_call.1} parent=31 // pred_region
          %s354 = smul.u32 4, %s17
          %356 = vsyncadd %s347, 0
          %s357 = smul.addr %s354, 4
          %s358 = scalar_lea.hbm %s3, %s357
          %s359 = sshll.u32 %s350, 4
          %s360 = int_to_ptr.vmem [resolvable:$true] %s359
          %s361 = sshll.u32 %s358, 4
          %s362 = int_to_ptr.hbm [resolvable:$true] %s361
          %367 = dma.vmem_to_hbm [thread:$0]  %s360, 256, %s362, %s347, 64, 64, 4
        $region36: #{tpu_custom_call.1} parent=31 // pred_fallthru
          _
      $region32: #{tpu_custom_call.1} parent=5 // pred_fallthru
        _
      %p368 = scmp.le.s32.totalorder 2, %s12
      // Predicated region
      $region37: #{tpu_custom_call.1} parent=5 // pred_check
        %p369 = pneg %p368
      $region38: #{tpu_custom_call.1} parent=5 // pred_check_branch
        %371 = sbr.rel (%p369) target = $region40
      $region39: #{tpu_custom_call.1} parent=5 // pred_region
        %s372 = ssub.s32 %s12, 2
        // Predicated region
        $region41: #{tpu_custom_call.1} parent=39 // pred_check
          %p373 = pneg %p109
        $region42: #{tpu_custom_call.1} parent=39 // pred_check_branch
          %375 = sbr.rel (%p373) target = $region44
        $region43: #{tpu_custom_call.1} parent=39 // pred_region
          %s376 = sand.u32 %s94, 1
          %s377 = scalar_lea.sflag [#allocation3], %s376
          %s378 = sand.u32 %s94, 1
          %s379 = smul.addr %s378, 16
          %s380 = scalar_lea.vmem [#allocation2], %s379
          %382 = dma.done %s377, 256
        $region44: #{tpu_custom_call.1} parent=39 // pred_fallthru
          _
      $region40: #{tpu_custom_call.1} parent=5 // pred_fallthru
        _
    $region6: #{tpu_custom_call.1} parent=1 // loop_footer
      %s16 = sadd.s32 1, %s12
    $region7: #{tpu_custom_call.1} parent=1 // loop_footer_branch
      %11 = sbr.rel target = $region3
    $region8: #{tpu_custom_call.1} parent=1 // loop_exit
      _
    %383 = vsyncpa [#allocation3], 1
    %s384 = scalar_lea.sflag [#allocation3], 1
    %385 = vsyncpa %s384, 1

</llo_original>
